<compile_context>
chip_gen: v6e
topology: v6e:2x2x1
jax: 0.10.0
libtpu: 0.0.40
codegen_flags: <defaults>
</compile_context>

<pallas_src>
import functools

import jax
import jax.numpy as jnp
from jax.experimental import pallas as pl
from jax.experimental.pallas import tpu as pltpu


def _round_up(n, m):
    return ((n + m - 1) // m) * m


def _fourier_conv_kernel(t12_ref, xm_ref, xh_ref, out_ref):
    """One (batch row, T tile) grid step.

    t12_ref : (256, F*128) fused banded filter factors (constant-index, VMEM resident).
    xm_ref  : (1, M, 128)  main window of the zero-padded signal (M = T_TILE/128).
    xh_ref  : (1, 8, 128)  halo: the 128 samples immediately after the main
              window (only row 0 is used; 8 rows keep the block (8,128)-aligned).
    out_ref : (1, F, M, 128) output tile.
    """
    m = xm_ref.shape[1]
    n_filt = out_ref.shape[1]

    xm = xm_ref[0]                                   # (M, 128)
    xh = xh_ref[0]                                   # (8, 128)
    x0 = jnp.concatenate([xm, xh], axis=0)           # (M+8, 128), sublane-aligned concat

    # Fused K=256 window: lanes 0:128 hold samples i..i+127 ("this" 128-block),
    # lanes 128:256 hold samples i+128..i+255 (window shifted by one row).
    x01 = jnp.concatenate([x0[:m], x0[1:m + 1]], axis=1)          # (M, 256)
    x01 = x01.astype(t12_ref.dtype)

    # One K=256 MXU matmul per filter; dot -> immediate lane-dense (128-wide)
    # store keeps the live accumulator bounded to (M, 128) f32.
    for f in range(n_filt):
        acc = jnp.dot(x01, t12_ref[:, f * 128:(f + 1) * 128],
                      preferred_element_type=jnp.float32)         # (M, 128) f32
        out_ref[0, f] = acc.astype(out_ref.dtype)


@functools.partial(jax.jit, static_argnums=(5,),
                   static_argnames=("t_tile", "compute_dtype", "out_dtype"))
def fourier_filter_bank(x, a, b, cos_basis, sin_basis, kernel_size, *,
                        t_tile=32768, compute_dtype=jnp.bfloat16,
                        out_dtype=jnp.float32):
    """x: (B, 1, T) -> (B, num_filters, T).

    compute_dtype: dtype fed to the MXU (bf16 default; f32 for full precision).
    out_dtype:     output dtype (f32 default; bf16 recommended on writeback-bound
                   v5e/v6e if the caller's accuracy budget allows).
    """
    B, C, T = x.shape
    assert C == 1
    ks = int(kernel_size)
    assert ks % 2 == 1 and ks <= 129, "kernel expects odd kernel_size <= 129"
    n_filt, _ = a.shape
    assert t_tile % 1024 == 0 and t_tile >= 1024

    # ---------- parameter-side preprocessing (O(F*ks), runs once) ----------
    w = (a @ cos_basis + b @ sin_basis).astype(jnp.float32)       # (F, ks) filter bank
    w129 = jnp.pad(w, ((0, 0), (0, 129 - ks)))                    # zero-extend taps to 129
    m_idx = jnp.arange(128)[:, None]
    j_idx = jnp.arange(128)[None, :]
    d1 = m_idx - j_idx                                            # tap for "this" 128-block
    d2 = m_idx + 128 - j_idx                                      # tap for "next" 128-block
    t1 = jnp.where(d1 >= 0, w129[:, jnp.clip(d1, 0, 128)], 0.0)   # (F, 128, 128)
    t2 = jnp.where(d2 <= 128, w129[:, jnp.clip(d2, 0, 128)], 0.0)
    t1 = t1.transpose(1, 0, 2).reshape(128, n_filt * 128)         # [m, f*128+j0]
    t2 = t2.transpose(1, 0, 2).reshape(128, n_filt * 128)
    t12 = jnp.concatenate([t1, t2], axis=0).astype(compute_dtype)  # (256, F*128), K fused

    # ---------- signal-side layout: zero-pad once, NO im2col in HBM ----------
    pad_left = ks // 2
    t_pad0 = _round_up(T, 1024)
    tile = min(t_tile, t_pad0)
    t_pad = _round_up(t_pad0, tile)
    nt = t_pad // tile
    m_rows = tile // 128
    mb = m_rows // 8                                  # halo block index step (8-row blocks)
    n_rows = t_pad // 128 + 8                         # +8-row halo after the last tile
    x_ext = jnp.pad(x[:, 0, :].astype(jnp.float32),
                    ((0, 0), (pad_left, n_rows * 128 - T - pad_left)))
    x2 = x_ext.reshape(B, n_rows, 128)

    out_itemsize = jnp.dtype(out_dtype).itemsize
    flops = 2 * B * t_pad * 256 * n_filt
    bytes_accessed = (4 * x2.size + B * n_filt * t_pad * out_itemsize
                      + t12.size * t12.dtype.itemsize)

    out4 = pl.pallas_call(
        _fourier_conv_kernel,
        out_shape=jax.ShapeDtypeStruct((B, n_filt, t_pad // 128, 128), out_dtype),
        grid=(B, nt),
        in_specs=[
            # Fused banded factors: constant index -> fetched once, VMEM resident.
            pl.BlockSpec((256, n_filt * 128), lambda bi, ti: (0, 0)),
            # Main x window for this tile.
            pl.BlockSpec((1, m_rows, 128), lambda bi, ti: (bi, ti, 0)),
            # 8-row halo starting right after the main window (same x2 array).
            pl.BlockSpec((1, 8, 128), lambda bi, ti: (bi, (ti + 1) * mb, 0)),
        ],
        out_specs=pl.BlockSpec((1, n_filt, m_rows, 128),
                               lambda bi, ti: (bi, 0, ti, 0)),
        compiler_params=pltpu.CompilerParams(
            # Fully auto-pipelined (no cross-step manual DMA), so both axes are
            # megacore-splittable — keeps both v7x TensorCores busy even at B=1.
            dimension_semantics=("parallel", "parallel")),
        cost_estimate=pl.CostEstimate(
            flops=flops, transcendentals=0, bytes_accessed=bytes_accessed),
    )(t12, x2, x2)

    # Memory layout of out4 already equals (B, F, T_pad): this reshape is free.
    out = out4.reshape(B, n_filt, t_pad)
    if t_pad != T:
        out = out[:, :, :T]
    return out


def _reference(x, a, b, cos_basis, sin_basis, kernel_size):
    kernels = a @ cos_basis + b @ sin_basis                        # (F, KS)
    return jax.lax.conv_general_dilated(
        x, kernels[:, None, :],
        window_strides=(1,),
        padding=[(kernel_size // 2, kernel_size // 2)],
        dimension_numbers=("NCH", "OIH", "NCH"))


if __name__ == "__main__":
    # Module hyper-parameters (defaults from the PyTorch __init__).
    num_filters = 4
    kernel_size = 129
    sample_rate = 100.0
    num_bases = 16
    f_min, f_max = 0.5, 30.0

    # Small shapes consistent with forward(): x is (B, 1, T_in).
    B, T = 2, 4096

    key = jax.random.PRNGKey(0)
    k_a, k_b, k_x = jax.random.split(key, 3)

    # Deterministic parameter init mirroring torch.randn(...) * 0.1.
    a = 0.1 * jax.random.normal(k_a, (num_filters, num_bases), jnp.float32)
    b = 0.1 * jax.random.normal(k_b, (num_filters, num_bases), jnp.float32)
    x = jax.random.normal(k_x, (B, 1, T), jnp.float32)

    # Buffers (t, freqs) and the Fourier bases, exactly as in the module:
    # t = linspace(-ks // 2, ks // 2, ks) / sample_rate  (Python floor-div).
    freqs = jnp.linspace(f_min, f_max, num_bases, dtype=jnp.float32)
    t = jnp.linspace(-kernel_size // 2, kernel_size // 2,
                     kernel_size, dtype=jnp.float32) / sample_rate
    cos_basis = jnp.cos(2.0 * jnp.pi * freqs[:, None] * t[None, :])   # (NB, KS)
    sin_basis = jnp.sin(2.0 * jnp.pi * freqs[:, None] * t[None, :])   # (NB, KS)

    ref = _reference(x, a, b, cos_basis, sin_basis, kernel_size)

    # (1) Default config: large T tile (single tile at T=4096), bf16 MXU passes.
    out = fourier_filter_bank(x, a, b, cos_basis, sin_basis, kernel_size)
    out = jax.block_until_ready(out)
    assert out.shape == (B, num_filters, T), out.shape
    assert jnp.allclose(out, ref, atol=5e-2, rtol=5e-2), (
        float(jnp.max(jnp.abs(out - ref))))

    # (2) Multi-tile path (exercises the halo across T-tile boundaries) with
    #     full f32 compute at a tighter tolerance.
    out_f32 = fourier_filter_bank(x, a, b, cos_basis, sin_basis, kernel_size,
                                  t_tile=1024, compute_dtype=jnp.float32)
    out_f32 = jax.block_until_ready(out_f32)
    assert jnp.allclose(out_f32, ref, atol=2e-2, rtol=2e-2), (
        float(jnp.max(jnp.abs(out_f32 - ref))))

    # (3) Ragged length: T not a multiple of 128 / tile (pad-to-tile + slice path).
    T2 = 640
    x_small = jax.random.normal(jax.random.PRNGKey(1), (1, 1, T2), jnp.float32)
    ref2 = _reference(x_small, a, b, cos_basis, sin_basis, kernel_size)
    out2 = fourier_filter_bank(x_small, a, b, cos_basis, sin_basis, kernel_size)
    out2 = jax.block_until_ready(out2)
    assert out2.shape == (1, num_filters, T2), out2.shape
    assert jnp.allclose(out2, ref2, atol=5e-2, rtol=5e-2), (
        float(jnp.max(jnp.abs(out2 - ref2))))

    print("KERNEL_OK")
</pallas_src>

<mosaic_0001>
module attributes {stable_mosaic.version = 11 : i64} {
  func.func @_fourier_conv_kernel(%arg0: i32, %arg1: i32, %arg2: memref<256x512xbf16, #tpu.memory_space<vmem>>, %arg3: memref<1x32x128xf32, #tpu.memory_space<vmem>>, %arg4: memref<1x8x128xf32, #tpu.memory_space<vmem>>, %arg5: memref<1x4x32x128xf32, #tpu.memory_space<vmem>>) attributes {dimension_semantics = [#tpu.dimension_semantics<parallel>, #tpu.dimension_semantics<parallel>], iteration_bounds = array<i64: 2, 1>, scalar_prefetch = 0 : i64, scratch_operands = 0 : i64, tpu.core_type = #tpu.core_type<tc>, window_params = [{pipeline_mode = #tpu.pipeline_mode<synchronous>, transform_indices = @transform_0, window_bounds = array<i64: 256, 512>}, {transform_indices = @transform_1, window_bounds = array<i64: 1, 32, 128>}, {transform_indices = @transform_2, window_bounds = array<i64: 1, 8, 128>}, {transform_indices = @transform_3, window_bounds = array<i64: 1, 4, 32, 128>}]} {
    %c0 = arith.constant 0 : index
    %c0_0 = arith.constant 0 : index
    %c0_1 = arith.constant 0 : index
    %0 = vector.load %arg3[%c0, %c0_0, %c0_1] : memref<1x32x128xf32, #tpu.memory_space<vmem>>, vector<1x32x128xf32>
    %1 = vector.shape_cast %0 : vector<1x32x128xf32> to vector<32x128xf32>
    %c0_2 = arith.constant 0 : index
    %c0_3 = arith.constant 0 : index
    %c0_4 = arith.constant 0 : index
    %2 = vector.load %arg4[%c0_2, %c0_3, %c0_4] : memref<1x8x128xf32, #tpu.memory_space<vmem>>, vector<1x8x128xf32>
    %3 = vector.shape_cast %2 : vector<1x8x128xf32> to vector<8x128xf32>
    %4 = tpu.concatenate %1, %3 in 0 : vector<32x128xf32>, vector<8x128xf32> -> vector<40x128xf32>
    %5 = vector.extract_strided_slice %4 {offsets = [0, 0], sizes = [32, 128], strides = [1, 1]} : vector<40x128xf32> to vector<32x128xf32>
    %6 = vector.extract_strided_slice %4 {offsets = [1, 0], sizes = [32, 128], strides = [1, 1]} : vector<40x128xf32> to vector<32x128xf32>
    %7 = tpu.concatenate %5, %6 in 1 : vector<32x128xf32>, vector<32x128xf32> -> vector<32x256xf32>
    %8 = arith.truncf %7 : vector<32x256xf32> to vector<32x256xbf16>
    %c0_5 = arith.constant 0 : index
    %c0_6 = arith.constant 0 : index
    %9 = vector.load %arg2[%c0_5, %c0_6] : memref<256x512xbf16, #tpu.memory_space<vmem>>, vector<256x128xbf16>
    %cst = arith.constant dense<0.000000e+00> : vector<32x128xf32>
    %10 = tpu.matmul %8, %9, %cst {dimension_numbers = #tpu.dot_dimension_numbers<[1], [0], [0], [1], [0, 0, 1, 1], [], []>} : vector<32x256xbf16>, vector<256x128xbf16>, vector<32x128xf32> -> vector<32x128xf32>
    %c0_7 = arith.constant 0 : index
    %c0_8 = arith.constant 0 : index
    %c0_9 = arith.constant 0 : index
    %c0_10 = arith.constant 0 : index
    %11 = vector.load %arg5[%c0_7, %c0_8, %c0_9, %c0_10] : memref<1x4x32x128xf32, #tpu.memory_space<vmem>>, vector<1x1x32x128xf32>
    %12 = vector.shape_cast %11 : vector<1x1x32x128xf32> to vector<32x128xf32>
    %13 = vector.shape_cast %10 : vector<32x128xf32> to vector<1x1x32x128xf32>
    tpu.vector_store %arg5[%c0_7, %c0_8, %c0_9, %c0_10], %13 {strides = array<i32>} : memref<1x4x32x128xf32, #tpu.memory_space<vmem>>, vector<1x1x32x128xf32>,
    %c0_11 = arith.constant 0 : index
    %c128 = arith.constant 128 : index
    %14 = vector.load %arg2[%c0_11, %c128] : memref<256x512xbf16, #tpu.memory_space<vmem>>, vector<256x128xbf16>
    %cst_12 = arith.constant dense<0.000000e+00> : vector<32x128xf32>
    %15 = tpu.matmul %8, %14, %cst_12 {dimension_numbers = #tpu.dot_dimension_numbers<[1], [0], [0], [1], [0, 0, 1, 1], [], []>} : vector<32x256xbf16>, vector<256x128xbf16>, vector<32x128xf32> -> vector<32x128xf32>
    %c0_13 = arith.constant 0 : index
    %c1 = arith.constant 1 : index
    %c0_14 = arith.constant 0 : index
    %c0_15 = arith.constant 0 : index
    %16 = vector.load %arg5[%c0_13, %c1, %c0_14, %c0_15] : memref<1x4x32x128xf32, #tpu.memory_space<vmem>>, vector<1x1x32x128xf32>
    %17 = vector.shape_cast %16 : vector<1x1x32x128xf32> to vector<32x128xf32>
    %18 = vector.shape_cast %15 : vector<32x128xf32> to vector<1x1x32x128xf32>
    tpu.vector_store %arg5[%c0_13, %c1, %c0_14, %c0_15], %18 {strides = array<i32>} : memref<1x4x32x128xf32, #tpu.memory_space<vmem>>, vector<1x1x32x128xf32>,
    %c0_16 = arith.constant 0 : index
    %c256 = arith.constant 256 : index
    %19 = vector.load %arg2[%c0_16, %c256] : memref<256x512xbf16, #tpu.memory_space<vmem>>, vector<256x128xbf16>
    %cst_17 = arith.constant dense<0.000000e+00> : vector<32x128xf32>
    %20 = tpu.matmul %8, %19, %cst_17 {dimension_numbers = #tpu.dot_dimension_numbers<[1], [0], [0], [1], [0, 0, 1, 1], [], []>} : vector<32x256xbf16>, vector<256x128xbf16>, vector<32x128xf32> -> vector<32x128xf32>
    %c0_18 = arith.constant 0 : index
    %c2 = arith.constant 2 : index
    %c0_19 = arith.constant 0 : index
    %c0_20 = arith.constant 0 : index
    %21 = vector.load %arg5[%c0_18, %c2, %c0_19, %c0_20] : memref<1x4x32x128xf32, #tpu.memory_space<vmem>>, vector<1x1x32x128xf32>
    %22 = vector.shape_cast %21 : vector<1x1x32x128xf32> to vector<32x128xf32>
    %23 = vector.shape_cast %20 : vector<32x128xf32> to vector<1x1x32x128xf32>
    tpu.vector_store %arg5[%c0_18, %c2, %c0_19, %c0_20], %23 {strides = array<i32>} : memref<1x4x32x128xf32, #tpu.memory_space<vmem>>, vector<1x1x32x128xf32>,
    %c0_21 = arith.constant 0 : index
    %c384 = arith.constant 384 : index
    %24 = vector.load %arg2[%c0_21, %c384] : memref<256x512xbf16, #tpu.memory_space<vmem>>, vector<256x128xbf16>
    %cst_22 = arith.constant dense<0.000000e+00> : vector<32x128xf32>
    %25 = tpu.matmul %8, %24, %cst_22 {dimension_numbers = #tpu.dot_dimension_numbers<[1], [0], [0], [1], [0, 0, 1, 1], [], []>} : vector<32x256xbf16>, vector<256x128xbf16>, vector<32x128xf32> -> vector<32x128xf32>
    %c0_23 = arith.constant 0 : index
    %c3 = arith.constant 3 : index
    %c0_24 = arith.constant 0 : index
    %c0_25 = arith.constant 0 : index
    %26 = vector.load %arg5[%c0_23, %c3, %c0_24, %c0_25] : memref<1x4x32x128xf32, #tpu.memory_space<vmem>>, vector<1x1x32x128xf32>
    %27 = vector.shape_cast %26 : vector<1x1x32x128xf32> to vector<32x128xf32>
    %28 = vector.shape_cast %25 : vector<32x128xf32> to vector<1x1x32x128xf32>
    tpu.vector_store %arg5[%c0_23, %c3, %c0_24, %c0_25], %28 {strides = array<i32>} : memref<1x4x32x128xf32, #tpu.memory_space<vmem>>, vector<1x1x32x128xf32>,
    return
  }
  func.func @transform_0(%arg0: i32, %arg1: i32) -> (i32, i32) {
    %c0_i32 = arith.constant 0 : i32
    %c0_i32_0 = arith.constant 0 : i32
    %c0_i32_1 = arith.constant 0 : i32
    return %c0_i32, %c0_i32_0 : i32, i32
  }
  func.func @transform_1(%arg0: i32, %arg1: i32) -> (i32, i32, i32) {
    %c0_i32 = arith.constant 0 : i32
    %c0_i32_0 = arith.constant 0 : i32
    return %arg0, %arg1, %c0_i32 : i32, i32, i32
  }
  func.func @transform_2(%arg0: i32, %arg1: i32) -> (i32, i32, i32) {
    %c1_i32 = arith.constant 1 : i32
    %0 = arith.addi %arg1, %c1_i32 : i32
    %c4_i32 = arith.constant 4 : i32
    %1 = arith.muli %0, %c4_i32 : i32
    %c0_i32 = arith.constant 0 : i32
    %c0_i32_0 = arith.constant 0 : i32
    return %arg0, %1, %c0_i32 : i32, i32, i32
  }
  func.func @transform_3(%arg0: i32, %arg1: i32) -> (i32, i32, i32, i32) {
    %c0_i32 = arith.constant 0 : i32
    %c0_i32_0 = arith.constant 0 : i32
    %c0_i32_1 = arith.constant 0 : i32
    return %arg0, %c0_i32, %arg1, %c0_i32_0 : i32, i32, i32, i32
  }
}

</mosaic_0001>

<llo_original>
// kernel: fourier_filter_bank.1
$region0: #{fourier_filter_bank.1}
  #allocation0 [shape = 'u32[]', space=smem, size = 0x4, offset = 0x4, fixed_abs, tag = 'smem constant byte address 0x4 - core index']
  #allocation1 [shape = 'u32[144,128]{1,0:T(1,128)}', space=vmem, size = 0x12000, scoped, tag = 'internal scratch']
  %s0 = inlined_call_operand.vmem [shape: bf16[256,512], index: 0, kind: input, shape index: {}]
  %s1 = inlined_call_operand.vmem [shape: f32[2,40,128], index: 1, kind: input, shape index: {}, may-alias: {1,2}]
  %s2 = inlined_call_operand.vmem [shape: f32[2,40,128], index: 2, kind: input, shape index: {}, may-alias: {1,2}]
  %s3 = inlined_call_operand.vmem [shape: f32[2,4,32,128], index: 3, kind: output, shape index: {}]
  %s4 = sld [smem:[#allocation0]]
  $region45: #{fourier_filter_bank.1} parent=0
    _
  %s6 = ssub.s32 1, %s4
  %s7 = scalar_select 0, %s6, %s4
  loop: start=0, step=1, limit=4
  $region2: #{fourier_filter_bank.1} parent=0 // loop_pre_header
    _
  $region3: #{fourier_filter_bank.1} parent=0 // loop_header
    %s9 = sphi 0, %s13
    %p10 = scmp.ge.s32.totalorder %s9, 4
    %s16 = sphi 0, %s28
    %s17 = sphi 0, %s24
    %s18 = sphi 0, %s16
    %s19 = sphi 0, %s17
    %s20 = sphi 0, %s18
    %s21 = sphi 0, %s19
    %s29 = sphi 0, %s29
    %s31 = sphi 0, %s29
    %s32 = sphi 0, %s31
    %s46 = sphi 0, %s32
    %s54 = sphi 0, %s56
    %s57 = sphi 0, %s54
    %s58 = sphi 0, %s57
    %s74 = sphi 0, %s58
    %s86 = sphi 0, %s88
    %s89 = sphi 0, %s86
    %s90 = sphi 0, %s89
    %s106 = sphi 0, %s90
    %s114 = sphi 0, %s116
    %s117 = sphi 0, %s114
    %s118 = sphi 0, %s117
    %s134 = sphi 0, %s118
  $region4: #{fourier_filter_bank.1} parent=0 // loop_header_branch
    %12 = sbr.rel (%p10) target = $region8
  $region5: #{fourier_filter_bank.1} parent=0 // loop_body
    %s14 = ssub.s32 %s9, 1
    %s15 = ssub.s32 %s9, 2
    %s22 = sadd.s32 1, %s17
    %p23 = scmp.ge.s32.totalorder %s22, 1
    %s24 = scalar_select %p23, 0, %s22
    %s25 = sadd.s32 1, %s16
    %s26 = scalar_select %p23, %s25, %s16
    %p27 = scmp.ge.s32.totalorder %s26, 2
    %s28 = scalar_select %p27, 0, %s26
    %s30 = sadd.s32 %s29, 1
    %p33 = scmp.eq.s32.totalorder %s9, 1
    %p34 = scmp.ne.s32.totalorder %s29, %s31
    %p35 = scmp.eq.s32.totalorder %s9, 0
    %p36 = por %p34, %p35
    %p37 = scmp.ne.s32.totalorder %s29, %s31
    %p38 = scmp.eq.s32.totalorder %s14, 1
    %p39 = por %p37, %p38
    %p40 = scmp.ne.s32.totalorder %s31, %s32
    %p41 = scmp.eq.s32.totalorder %s14, 0
    %p42 = por %p40, %p41
    %p43 = scmp.ne.s32.totalorder %s31, %s32
    %p44 = scmp.eq.s32.totalorder %s15, 1
    %p45 = por %p43, %p44
    %p47 = scmp.ne.s32.totalorder %s32, %s46
    %p48 = scmp.eq.s32.totalorder %s15, 0
    %p49 = por %p47, %p48
    %s50 = ssub.s32 %s16, %s28
    %s51 = ssub.s32 %s17, %s24
    %s52 = sor.u32 %s50, %s51
    %p53 = scmp.eq.s32.totalorder %s52, 0
    %s55 = sadd.s32 %s54, 1
    %s56 = scalar_select %p53, %s54, %s55
    %p59 = pneg %p53
    %p60 = scmp.eq.s32.totalorder %s9, 1
    %p61 = por %p59, %p60
    %p62 = scmp.ne.s32.totalorder %s54, %s57
    %p63 = scmp.eq.s32.totalorder %s9, 0
    %p64 = por %p62, %p63
    %p65 = scmp.ne.s32.totalorder %s54, %s57
    %p66 = scmp.eq.s32.totalorder %s14, 1
    %p67 = por %p65, %p66
    %p68 = scmp.ne.s32.totalorder %s57, %s58
    %p69 = scmp.eq.s32.totalorder %s14, 0
    %p70 = por %p68, %p69
    %p71 = scmp.ne.s32.totalorder %s57, %s58
    %p72 = scmp.eq.s32.totalorder %s15, 1
    %p73 = por %p71, %p72
    %p75 = scmp.ne.s32.totalorder %s58, %s74
    %p76 = scmp.eq.s32.totalorder %s15, 0
    %p77 = por %p75, %p76
    %s78 = sadd.s32 %s17, 1
    %s79 = smul.u32 %s78, 4
    %s80 = sadd.s32 %s24, 1
    %s81 = smul.u32 %s80, 4
    %s82 = ssub.s32 %s16, %s28
    %s83 = ssub.s32 %s79, %s81
    %s84 = sor.u32 %s82, %s83
    %p85 = scmp.eq.s32.totalorder %s84, 0
    %s87 = sadd.s32 %s86, 1
    %s88 = scalar_select %p85, %s86, %s87
    %p91 = pneg %p85
    %p92 = scmp.eq.s32.totalorder %s9, 1
    %p93 = por %p91, %p92
    %p94 = scmp.ne.s32.totalorder %s86, %s89
    %p95 = scmp.eq.s32.totalorder %s9, 0
    %p96 = por %p94, %p95
    %p97 = scmp.ne.s32.totalorder %s86, %s89
    %p98 = scmp.eq.s32.totalorder %s14, 1
    %p99 = por %p97, %p98
    %p100 = scmp.ne.s32.totalorder %s89, %s90
    %p101 = scmp.eq.s32.totalorder %s14, 0
    %p102 = por %p100, %p101
    %p103 = scmp.ne.s32.totalorder %s89, %s90
    %p104 = scmp.eq.s32.totalorder %s15, 1
    %p105 = por %p103, %p104
    %p107 = scmp.ne.s32.totalorder %s90, %s106
    %p108 = scmp.eq.s32.totalorder %s15, 0
    %p109 = por %p107, %p108
    %s110 = ssub.s32 %s16, %s28
    %s111 = ssub.s32 %s17, %s24
    %s112 = sor.u32 %s110, %s111
    %p113 = scmp.eq.s32.totalorder %s112, 0
    %s115 = sadd.s32 %s114, 1
    %s116 = scalar_select %p113, %s114, %s115
    %p119 = pneg %p113
    %p120 = scmp.eq.s32.totalorder %s9, 1
    %p121 = por %p119, %p120
    %p122 = scmp.ne.s32.totalorder %s114, %s117
    %p123 = scmp.eq.s32.totalorder %s9, 0
    %p124 = por %p122, %p123
    %p125 = scmp.ne.s32.totalorder %s114, %s117
    %p126 = scmp.eq.s32.totalorder %s14, 1
    %p127 = por %p125, %p126
    %p128 = scmp.ne.s32.totalorder %s117, %s118
    %p129 = scmp.eq.s32.totalorder %s14, 0
    %p130 = por %p128, %p129
    %p131 = scmp.ne.s32.totalorder %s117, %s118
    %p132 = scmp.eq.s32.totalorder %s15, 1
    %p133 = por %p131, %p132
    %p135 = scmp.ne.s32.totalorder %s118, %s134
    %p136 = scmp.eq.s32.totalorder %s15, 0
    %p137 = por %p135, %p136
    %p138 = scmp.le.s32.totalorder 1, %s9
    %p139 = scmp.lt.s32.totalorder %s9, 3
    %p140 = pnand %p138, %p139
    %p141 = pneg %p140
    // Predicated region
    $region9: #{fourier_filter_bank.1} parent=5 // pred_check
      _
    $region10: #{fourier_filter_bank.1} parent=5 // pred_check_branch
      %143 = sbr.rel (%p140) target = $region12
    $region11: #{fourier_filter_bank.1} parent=5 // pred_region
      %s144 = ssub.s32 %s9, 1
      // Predicated region
      $region13: #{fourier_filter_bank.1} parent=11 // pred_check
        %p145 = pneg %p42
      $region14: #{fourier_filter_bank.1} parent=11 // pred_check_branch
        %147 = sbr.rel (%p145) target = $region16
      $region15: #{fourier_filter_bank.1} parent=11 // pred_region
        _
      $region16: #{fourier_filter_bank.1} parent=11 // pred_fallthru
        _
    $region12: #{fourier_filter_bank.1} parent=5 // pred_fallthru
      _
    %p148 = scmp.lt.s32.totalorder %s9, 2
    // Predicated region
    $region17: #{fourier_filter_bank.1} parent=5 // pred_check
      %p149 = pneg %p148
    $region18: #{fourier_filter_bank.1} parent=5 // pred_check_branch
      %151 = sbr.rel (%p149) target = $region20
    $region19: #{fourier_filter_bank.1} parent=5 // pred_region
      // Predicated region
      $region21: #{fourier_filter_bank.1} parent=19 // pred_check
        %p152 = pneg %p64
      $region22: #{fourier_filter_bank.1} parent=19 // pred_check_branch
        %154 = sbr.rel (%p152) target = $region24
      $region23: #{fourier_filter_bank.1} parent=19 // pred_region
        %s155 = smul.u32 4, %s17
        %s156 = ssub.s32 5, %s155
        %p157 = scmp.lt.s32.totalorder %s156, 4
        %s158 = scalar_select %p157, %s156, 4
        %s159 = smul.u32 128, %s158
        %p160 = scmp.lt.s32.totalorder %s16, 1
        %s161 = scalar_select %p160, %s16, 1
        %p162 = scmp.lt.s32.totalorder %s155, 4
        %s163 = scalar_select %p162, %s155, 4
        %s164 = smul.addr %s161, 5
        %s165 = sadd.s32 %s163, %s164
        %s166 = smul.addr %s165, 8
        %s167 = scalar_lea.vmem %s1, %s166
        %s168 = smul.u32 4, %s17
        %s169 = ssub.s32 5, %s168
        %p170 = scmp.lt.s32.totalorder %s169, 4
        %s171 = scalar_select %p170, %s169, 4
        %s172 = smul.u32 128, %s171
      $region24: #{fourier_filter_bank.1} parent=19 // pred_fallthru
        _
      // Predicated region
      $region25: #{fourier_filter_bank.1} parent=19 // pred_check
        %p173 = pneg %p96
      $region26: #{fourier_filter_bank.1} parent=19 // pred_check_branch
        %175 = sbr.rel (%p173) target = $region28
      $region27: #{fourier_filter_bank.1} parent=19 // pred_region
        %s176 = sadd.s32 %s17, 1
        %s177 = smul.u32 %s176, 4
        %p178 = scmp.lt.s32.totalorder %s16, 1
        %s179 = scalar_select %p178, %s16, 1
        %p180 = scmp.lt.s32.totalorder %s177, 4
        %s181 = scalar_select %p180, %s177, 4
        %s182 = smul.addr %s179, 5
        %s183 = sadd.s32 %s181, %s182
        %s184 = smul.addr %s183, 8
        %s185 = scalar_lea.vmem %s2, %s184
        %s186 = sadd.s32 %s17, 1
        %s187 = smul.u32 %s186, 4
      $region28: #{fourier_filter_bank.1} parent=19 // pred_fallthru
        _
    $region20: #{fourier_filter_bank.1} parent=5 // pred_fallthru
      _
    %p188 = scmp.le.s32.totalorder 1, %s9
    %p189 = scmp.lt.s32.totalorder %s9, 3
    %p190 = pnand %p188, %p189
    %p191 = pneg %p190
    // Predicated region
    $region29: #{fourier_filter_bank.1} parent=5 // pred_check
      _
    $region30: #{fourier_filter_bank.1} parent=5 // pred_check_branch
      %193 = sbr.rel (%p190) target = $region32
    $region31: #{fourier_filter_bank.1} parent=5 // pred_region
      %s194 = ssub.s32 %s9, 1
      %p195 = pneg %p42
      %p196 = pneg %p39
      %s197 = smul.u32 4, %s19
      %s198 = ssub.s32 5, %s197
      %p199 = scmp.lt.s32.totalorder %s198, 4
      %s200 = scalar_select %p199, %s198, 4
      %s201 = smul.u32 128, %s200
      %p202 = scmp.lt.s32.totalorder %s18, 1
      %s203 = scalar_select %p202, %s18, 1
      %p204 = scmp.lt.s32.totalorder %s197, 4
      %s205 = scalar_select %p204, %s197, 4
      %s206 = smul.addr %s203, 5
      %s207 = sadd.s32 %s205, %s206
      %s208 = smul.addr %s207, 8
      %s209 = scalar_lea.vmem %s1, %s208
      %p210 = pneg %p70
      %p211 = pneg %p67
      %s212 = sadd.s32 %s19, 1
      %s213 = smul.u32 %s212, 4
      %p214 = scmp.lt.s32.totalorder %s18, 1
      %s215 = scalar_select %p214, %s18, 1
      %p216 = scmp.lt.s32.totalorder %s213, 4
      %s217 = scalar_select %p216, %s213, 4
      %s218 = smul.addr %s215, 5
      %s219 = sadd.s32 %s217, %s218
      %s220 = smul.addr %s219, 8
      %s221 = scalar_lea.vmem %s2, %s220
      %p222 = pneg %p102
      %p223 = pneg %p99
      %p224 = pneg %p130
      %p225 = pneg %p127
      %s226 = smul.u32 4, %s19
      %p227 = scmp.lt.s32.totalorder %s18, 1
      %s228 = scalar_select %p227, %s18, 1
      %p229 = scmp.lt.s32.totalorder %s226, 3
      %s230 = scalar_select %p229, %s226, 3
      %s231 = smul.addr %s228, 16
      %s232 = sadd.s32 %s230, %s231
      %s233 = smul.addr %s232, 8
      %s234 = scalar_lea.vmem %s3, %s233
      %s235 = smul.u32 4, %s19
      %s236 = ssub.s32 5, %s235
      %p237 = scmp.lt.s32.totalorder %s236, 4
      %s238 = scalar_select %p237, %s236, 4
      %s239 = smul.u32 128, %s238
      %p240 = scmp.lt.s32.totalorder %s18, 1
      %s241 = scalar_select %p240, %s18, 1
      %p242 = scmp.lt.s32.totalorder %s235, 4
      %s243 = scalar_select %p242, %s235, 4
      %s244 = smul.addr %s241, 5
      %s245 = sadd.s32 %s243, %s244
      %s246 = smul.addr %s245, 8
      %s247 = scalar_lea.vmem %s1, %s246
      %s248 = smul.u32 4, %s19
      %s249 = ssub.s32 5, %s248
      %p250 = scmp.lt.s32.totalorder %s249, 4
      %s251 = scalar_select %p250, %s249, 4
      %s252 = smul.u32 128, %s251
      %s253 = sadd.s32 %s19, 1
      %s254 = smul.u32 %s253, 4
      %p255 = scmp.lt.s32.totalorder %s18, 1
      %s256 = scalar_select %p255, %s18, 1
      %p257 = scmp.lt.s32.totalorder %s254, 4
      %s258 = scalar_select %p257, %s254, 4
      %s259 = smul.addr %s256, 5
      %s260 = sadd.s32 %s258, %s259
      %s261 = smul.addr %s260, 8
      %s262 = scalar_lea.vmem %s2, %s261
      %s263 = sadd.s32 %s19, 1
      %s264 = smul.u32 %s263, 4
      %s265 = smul.u32 4, %s19
      %p266 = scmp.lt.s32.totalorder %s18, 1
      %s267 = scalar_select %p266, %s18, 1
      %p268 = scmp.lt.s32.totalorder %s265, 3
      %s269 = scalar_select %p268, %s265, 3
      %s270 = smul.addr %s267, 16
      %s271 = sadd.s32 %s269, %s270
      %s272 = smul.addr %s271, 8
      %s273 = scalar_lea.vmem %s3, %s272
      %s274 = smul.u32 4, %s19
      %v276 = vld [vmem:[%s247] sm:$0xff]
      %v277 = vld [vmem:[%s247 + $0x8] sm:$0xff]
      %v278 = vld [vmem:[%s247 + $0x10] sm:$0xff]
      %v279 = vld [vmem:[%s247 + $0x18] sm:$0xff]
      %v280 = vld [vmem:[%s262] sm:$0xff]
      %vm286 = vcmask 1046528
      %v287 = vrot.slane %v276, 1
      %v288 = vrot.slane %v277, 1
      %v289 = vsel %vm286, %v287, %v288
      %v290 = vrot.slane %v278, 1
      %v291 = vsel %vm286, %v288, %v290
      %v292 = vrot.slane %v279, 1
      %v293 = vsel %vm286, %v290, %v292
      %v294 = vrot.slane %v280, 1
      %v295 = vsel %vm286, %v292, %v294
      %v300 = vpack.c.bf16 %v277, %v276
      %v301 = vpack.c.bf16 %v291, %v289
      %v302 = vpack.c.bf16 %v279, %v278
      %v303 = vpack.c.bf16 %v295, %v293
      %v304 = vld [vmem:[%s0] sm:$0xf]
      %v305 = vld [vmem:[%s0 + $0x10] sm:$0xf]
      %v306 = vld [vmem:[%s0 + $0x20] sm:$0xf]
      %v307 = vld [vmem:[%s0 + $0x30] sm:$0xf]
      %v308 = vld [vmem:[%s0 + $0x40] sm:$0xf]
      %v309 = vld [vmem:[%s0 + $0x50] sm:$0xf]
      %v310 = vld [vmem:[%s0 + $0x60] sm:$0xf]
      %v311 = vld [vmem:[%s0 + $0x70] sm:$0xf]
      %v312 = vld [vmem:[%s0 + $0x80] sm:$0xf]
      %v313 = vld [vmem:[%s0 + $0x90] sm:$0xf]
      %v314 = vld [vmem:[%s0 + $0xa0] sm:$0xf]
      %v315 = vld [vmem:[%s0 + $0xb0] sm:$0xf]
      %v316 = vld [vmem:[%s0 + $0xc0] sm:$0xf]
      %v317 = vld [vmem:[%s0 + $0xd0] sm:$0xf]
      %v318 = vld [vmem:[%s0 + $0xe0] sm:$0xf]
      %v319 = vld [vmem:[%s0 + $0xf0] sm:$0xf]
      %v320 = vld [vmem:[%s0 + $0x100] sm:$0xf]
      %v321 = vld [vmem:[%s0 + $0x110] sm:$0xf]
      %v322 = vld [vmem:[%s0 + $0x120] sm:$0xf]
      %v323 = vld [vmem:[%s0 + $0x130] sm:$0xf]
      %v324 = vld [vmem:[%s0 + $0x140] sm:$0xf]
      %v325 = vld [vmem:[%s0 + $0x150] sm:$0xf]
      %v326 = vld [vmem:[%s0 + $0x160] sm:$0xf]
      %v327 = vld [vmem:[%s0 + $0x170] sm:$0xf]
      %v328 = vld [vmem:[%s0 + $0x180] sm:$0xf]
      %v329 = vld [vmem:[%s0 + $0x190] sm:$0xf]
      %v330 = vld [vmem:[%s0 + $0x1a0] sm:$0xf]
      %v331 = vld [vmem:[%s0 + $0x1b0] sm:$0xf]
      %v332 = vld [vmem:[%s0 + $0x1c0] sm:$0xf]
      %v333 = vld [vmem:[%s0 + $0x1d0] sm:$0xf]
      %v334 = vld [vmem:[%s0 + $0x1e0] sm:$0xf]
      %v335 = vld [vmem:[%s0 + $0x1f0] sm:$0xf]
      %v368 = vunpack.c.l.b16 %v304
      %v369 = vunpack.c.l.b16 %v305
      %v370 = vunpack.c.l.b16 %v306
      %v371 = vunpack.c.l.b16 %v307
      %v372 = vunpack.c.l.b16 %v308
      %v373 = vunpack.c.l.b16 %v309
      %v374 = vunpack.c.l.b16 %v310
      %v375 = vunpack.c.l.b16 %v311
      %v376 = vunpack.c.l.b16 %v312
      %v377 = vunpack.c.l.b16 %v313
      %v378 = vunpack.c.l.b16 %v314
      %v379 = vunpack.c.l.b16 %v315
      %v380 = vunpack.c.l.b16 %v316
      %v381 = vunpack.c.l.b16 %v317
      %v382 = vunpack.c.l.b16 %v318
      %v383 = vunpack.c.l.b16 %v319
      %v384 = vunpack.c.l.b16 %v320
      %v385 = vunpack.c.l.b16 %v321
      %v386 = vunpack.c.l.b16 %v322
      %v387 = vunpack.c.l.b16 %v323
      %v388 = vunpack.c.l.b16 %v324
      %v389 = vunpack.c.l.b16 %v325
      %v390 = vunpack.c.l.b16 %v326
      %v391 = vunpack.c.l.b16 %v327
      %v392 = vunpack.c.l.b16 %v328
      %v393 = vunpack.c.l.b16 %v329
      %v394 = vunpack.c.l.b16 %v330
      %v395 = vunpack.c.l.b16 %v331
      %v396 = vunpack.c.l.b16 %v332
      %v397 = vunpack.c.l.b16 %v333
      %v398 = vunpack.c.l.b16 %v334
      %v399 = vunpack.c.l.b16 %v335
      %v400 = vpack.c.b16 %v369, %v368
      %v401 = vpack.c.b16 %v371, %v370
      %v402 = vpack.c.b16 %v373, %v372
      %v403 = vpack.c.b16 %v375, %v374
      %v404 = vpack.c.b16 %v377, %v376
      %v405 = vpack.c.b16 %v379, %v378
      %v406 = vpack.c.b16 %v381, %v380
      %v407 = vpack.c.b16 %v383, %v382
      %v408 = vpack.c.b16 %v385, %v384
      %v409 = vpack.c.b16 %v387, %v386
      %v410 = vpack.c.b16 %v389, %v388
      %v411 = vpack.c.b16 %v391, %v390
      %v412 = vpack.c.b16 %v393, %v392
      %v413 = vpack.c.b16 %v395, %v394
      %v414 = vpack.c.b16 %v397, %v396
      %v415 = vpack.c.b16 %v399, %v398
      %432 = vmatprep.subr.bf16.mxu0 0
      %433 = vmatpush1.bf16.msra.mxu0 %v407
      %434 = vmatprep.subr.bf16.mxu0 0
      %435 = vmatpush1.bf16.msra.mxu0 %v406
      %436 = vmatprep.subr.bf16.mxu0 0
      %437 = vmatpush1.bf16.msra.mxu0 %v405
      %438 = vmatprep.subr.bf16.mxu0 0
      %439 = vmatpush1.bf16.msra.mxu0 %v404
      %440 = vmatprep.subr.bf16.mxu0 0
      %441 = vmatpush1.bf16.msra.mxu0 %v403
      %442 = vmatprep.subr.bf16.mxu0 0
      %443 = vmatpush1.bf16.msra.mxu0 %v402
      %444 = vmatprep.subr.bf16.mxu0 0
      %445 = vmatpush1.bf16.msra.mxu0 %v401
      %446 = vmatprep.subr.bf16.mxu0 0
      %447 = vmatpush1.bf16.msra.mxu0 %v400
      %448 = vmatprep.subr.bf16.mxu0 0
      %449 = vmatpush2.bf16.msra.mxu0 %v415
      %450 = vmatprep.subr.bf16.mxu0 0
      %451 = vmatpush2.bf16.msra.mxu0 %v414
      %452 = vmatprep.subr.bf16.mxu0 0
      %453 = vmatpush2.bf16.msra.mxu0 %v413
      %454 = vmatprep.subr.bf16.mxu0 0
      %455 = vmatpush2.bf16.msra.mxu0 %v412
      %456 = vmatprep.subr.bf16.mxu0 0
      %457 = vmatpush2.bf16.msra.mxu0 %v411
      %458 = vmatprep.subr.bf16.mxu0 0
      %459 = vmatpush2.bf16.msra.mxu0 %v410
      %460 = vmatprep.subr.bf16.mxu0 0
      %461 = vmatpush2.bf16.msra.mxu0 %v409
      %462 = vmatprep.subr.bf16.mxu0 0
      %463 = vmatpush2.bf16.msra.mxu0 %v408
      %464 = vmatprep.mubr.bf16.mxu0 %v301
      %465 = vmatmul.mubr.bf16.gmra.mxu0 %v300
      %v466 = vpop.f32.mrf.mxu0
      %v467 = vadd.f32 0.0, %v466
      %v468 = vpop.f32.mrf.mxu0
      %v469 = vpop.f32.mrf.mxu0
      %v470 = vadd.f32 0.0, %v469
      %v471 = vpop.f32.mrf.mxu0
      %472 = vmatprep.mubr.bf16.mxu0 %v303
      %473 = vmatmul.mubr.bf16.gmra.mxu0 %v302
      %v474 = vpop.f32.mrf.mxu0
      %v475 = vadd.f32 0.0, %v474
      %v476 = vpop.f32.mrf.mxu0
      %v477 = vpop.f32.mrf.mxu0
      %v478 = vadd.f32 0.0, %v477
      %v479 = vpop.f32.mrf.mxu0
      %480 = vdwg.mxu0
      %481 = vst [vmem:[%s273] sm:$0xff] %v467
      %482 = vst [vmem:[%s273 + $0x8] sm:$0xff] %v470
      %483 = vst [vmem:[%s273 + $0x10] sm:$0xff] %v475
      %484 = vst [vmem:[%s273 + $0x18] sm:$0xff] %v478
      %v485 = vld [vmem:[%s0 + $0x4] sm:$0xf]
      %v486 = vld [vmem:[%s0 + $0x14] sm:$0xf]
      %v487 = vld [vmem:[%s0 + $0x24] sm:$0xf]
      %v488 = vld [vmem:[%s0 + $0x34] sm:$0xf]
      %v489 = vld [vmem:[%s0 + $0x44] sm:$0xf]
      %v490 = vld [vmem:[%s0 + $0x54] sm:$0xf]
      %v491 = vld [vmem:[%s0 + $0x64] sm:$0xf]
      %v492 = vld [vmem:[%s0 + $0x74] sm:$0xf]
      %v493 = vld [vmem:[%s0 + $0x84] sm:$0xf]
      %v494 = vld [vmem:[%s0 + $0x94] sm:$0xf]
      %v495 = vld [vmem:[%s0 + $0xa4] sm:$0xf]
      %v496 = vld [vmem:[%s0 + $0xb4] sm:$0xf]
      %v497 = vld [vmem:[%s0 + $0xc4] sm:$0xf]
      %v498 = vld [vmem:[%s0 + $0xd4] sm:$0xf]
      %v499 = vld [vmem:[%s0 + $0xe4] sm:$0xf]
      %v500 = vld [vmem:[%s0 + $0xf4] sm:$0xf]
      %v501 = vld [vmem:[%s0 + $0x104] sm:$0xf]
      %v502 = vld [vmem:[%s0 + $0x114] sm:$0xf]
      %v503 = vld [vmem:[%s0 + $0x124] sm:$0xf]
      %v504 = vld [vmem:[%s0 + $0x134] sm:$0xf]
      %v505 = vld [vmem:[%s0 + $0x144] sm:$0xf]
      %v506 = vld [vmem:[%s0 + $0x154] sm:$0xf]
      %v507 = vld [vmem:[%s0 + $0x164] sm:$0xf]
      %v508 = vld [vmem:[%s0 + $0x174] sm:$0xf]
      %v509 = vld [vmem:[%s0 + $0x184] sm:$0xf]
      %v510 = vld [vmem:[%s0 + $0x194] sm:$0xf]
      %v511 = vld [vmem:[%s0 + $0x1a4] sm:$0xf]
      %v512 = vld [vmem:[%s0 + $0x1b4] sm:$0xf]
      %v513 = vld [vmem:[%s0 + $0x1c4] sm:$0xf]
      %v514 = vld [vmem:[%s0 + $0x1d4] sm:$0xf]
      %v515 = vld [vmem:[%s0 + $0x1e4] sm:$0xf]
      %v516 = vld [vmem:[%s0 + $0x1f4] sm:$0xf]
      %v549 = vunpack.c.l.b16 %v485
      %v550 = vunpack.c.l.b16 %v486
      %v551 = vunpack.c.l.b16 %v487
      %v552 = vunpack.c.l.b16 %v488
      %v553 = vunpack.c.l.b16 %v489
      %v554 = vunpack.c.l.b16 %v490
      %v555 = vunpack.c.l.b16 %v491
      %v556 = vunpack.c.l.b16 %v492
      %v557 = vunpack.c.l.b16 %v493
      %v558 = vunpack.c.l.b16 %v494
      %v559 = vunpack.c.l.b16 %v495
      %v560 = vunpack.c.l.b16 %v496
      %v561 = vunpack.c.l.b16 %v497
      %v562 = vunpack.c.l.b16 %v498
      %v563 = vunpack.c.l.b16 %v499
      %v564 = vunpack.c.l.b16 %v500
      %v565 = vunpack.c.l.b16 %v501
      %v566 = vunpack.c.l.b16 %v502
      %v567 = vunpack.c.l.b16 %v503
      %v568 = vunpack.c.l.b16 %v504
      %v569 = vunpack.c.l.b16 %v505
      %v570 = vunpack.c.l.b16 %v506
      %v571 = vunpack.c.l.b16 %v507
      %v572 = vunpack.c.l.b16 %v508
      %v573 = vunpack.c.l.b16 %v509
      %v574 = vunpack.c.l.b16 %v510
      %v575 = vunpack.c.l.b16 %v511
      %v576 = vunpack.c.l.b16 %v512
      %v577 = vunpack.c.l.b16 %v513
      %v578 = vunpack.c.l.b16 %v514
      %v579 = vunpack.c.l.b16 %v515
      %v580 = vunpack.c.l.b16 %v516
      %v581 = vpack.c.b16 %v550, %v549
      %v582 = vpack.c.b16 %v552, %v551
      %v583 = vpack.c.b16 %v554, %v553
      %v584 = vpack.c.b16 %v556, %v555
      %v585 = vpack.c.b16 %v558, %v557
      %v586 = vpack.c.b16 %v560, %v559
      %v587 = vpack.c.b16 %v562, %v561
      %v588 = vpack.c.b16 %v564, %v563
      %v589 = vpack.c.b16 %v566, %v565
      %v590 = vpack.c.b16 %v568, %v567
      %v591 = vpack.c.b16 %v570, %v569
      %v592 = vpack.c.b16 %v572, %v571
      %v593 = vpack.c.b16 %v574, %v573
      %v594 = vpack.c.b16 %v576, %v575
      %v595 = vpack.c.b16 %v578, %v577
      %v596 = vpack.c.b16 %v580, %v579
      %613 = vmatprep.subr.bf16.mxu0 0
      %614 = vmatpush1.bf16.msra.mxu0 %v588
      %615 = vmatprep.subr.bf16.mxu0 0
      %616 = vmatpush1.bf16.msra.mxu0 %v587
      %617 = vmatprep.subr.bf16.mxu0 0
      %618 = vmatpush1.bf16.msra.mxu0 %v586
      %619 = vmatprep.subr.bf16.mxu0 0
      %620 = vmatpush1.bf16.msra.mxu0 %v585
      %621 = vmatprep.subr.bf16.mxu0 0
      %622 = vmatpush1.bf16.msra.mxu0 %v584
      %623 = vmatprep.subr.bf16.mxu0 0
      %624 = vmatpush1.bf16.msra.mxu0 %v583
      %625 = vmatprep.subr.bf16.mxu0 0
      %626 = vmatpush1.bf16.msra.mxu0 %v582
      %627 = vmatprep.subr.bf16.mxu0 0
      %628 = vmatpush1.bf16.msra.mxu0 %v581
      %629 = vmatprep.subr.bf16.mxu0 0
      %630 = vmatpush2.bf16.msra.mxu0 %v596
      %631 = vmatprep.subr.bf16.mxu0 0
      %632 = vmatpush2.bf16.msra.mxu0 %v595
      %633 = vmatprep.subr.bf16.mxu0 0
      %634 = vmatpush2.bf16.msra.mxu0 %v594
      %635 = vmatprep.subr.bf16.mxu0 0
      %636 = vmatpush2.bf16.msra.mxu0 %v593
      %637 = vmatprep.subr.bf16.mxu0 0
      %638 = vmatpush2.bf16.msra.mxu0 %v592
      %639 = vmatprep.subr.bf16.mxu0 0
      %640 = vmatpush2.bf16.msra.mxu0 %v591
      %641 = vmatprep.subr.bf16.mxu0 0
      %642 = vmatpush2.bf16.msra.mxu0 %v590
      %643 = vmatprep.subr.bf16.mxu0 0
      %644 = vmatpush2.bf16.msra.mxu0 %v589
      %645 = vmatprep.mubr.bf16.mxu0 %v301
      %646 = vmatmul.mubr.bf16.gmra.mxu0 %v300
      %v647 = vpop.f32.mrf.mxu0
      %v648 = vadd.f32 0.0, %v647
      %v649 = vpop.f32.mrf.mxu0
      %v650 = vpop.f32.mrf.mxu0
      %v651 = vadd.f32 0.0, %v650
      %v652 = vpop.f32.mrf.mxu0
      %653 = vmatprep.mubr.bf16.mxu0 %v303
      %654 = vmatmul.mubr.bf16.gmra.mxu0 %v302
      %v655 = vpop.f32.mrf.mxu0
      %v656 = vadd.f32 0.0, %v655
      %v657 = vpop.f32.mrf.mxu0
      %v658 = vpop.f32.mrf.mxu0
      %v659 = vadd.f32 0.0, %v658
      %v660 = vpop.f32.mrf.mxu0
      %661 = vdwg.mxu0
      %s662 = scalar_lea.vmem %s273, 32
      %663 = vst [vmem:[%s662] sm:$0xff] %v648
      %664 = vst [vmem:[%s662 + $0x8] sm:$0xff] %v651
      %665 = vst [vmem:[%s662 + $0x10] sm:$0xff] %v656
      %666 = vst [vmem:[%s662 + $0x18] sm:$0xff] %v659
      %v667 = vld [vmem:[%s0 + $0x8] sm:$0xf]
      %v668 = vld [vmem:[%s0 + $0x18] sm:$0xf]
      %v669 = vld [vmem:[%s0 + $0x28] sm:$0xf]
      %v670 = vld [vmem:[%s0 + $0x38] sm:$0xf]
      %v671 = vld [vmem:[%s0 + $0x48] sm:$0xf]
      %v672 = vld [vmem:[%s0 + $0x58] sm:$0xf]
      %v673 = vld [vmem:[%s0 + $0x68] sm:$0xf]
      %v674 = vld [vmem:[%s0 + $0x78] sm:$0xf]
      %v675 = vld [vmem:[%s0 + $0x88] sm:$0xf]
      %v676 = vld [vmem:[%s0 + $0x98] sm:$0xf]
      %v677 = vld [vmem:[%s0 + $0xa8] sm:$0xf]
      %v678 = vld [vmem:[%s0 + $0xb8] sm:$0xf]
      %v679 = vld [vmem:[%s0 + $0xc8] sm:$0xf]
      %v680 = vld [vmem:[%s0 + $0xd8] sm:$0xf]
      %v681 = vld [vmem:[%s0 + $0xe8] sm:$0xf]
      %v682 = vld [vmem:[%s0 + $0xf8] sm:$0xf]
      %v683 = vld [vmem:[%s0 + $0x108] sm:$0xf]
      %v684 = vld [vmem:[%s0 + $0x118] sm:$0xf]
      %v685 = vld [vmem:[%s0 + $0x128] sm:$0xf]
      %v686 = vld [vmem:[%s0 + $0x138] sm:$0xf]
      %v687 = vld [vmem:[%s0 + $0x148] sm:$0xf]
      %v688 = vld [vmem:[%s0 + $0x158] sm:$0xf]
      %v689 = vld [vmem:[%s0 + $0x168] sm:$0xf]
      %v690 = vld [vmem:[%s0 + $0x178] sm:$0xf]
      %v691 = vld [vmem:[%s0 + $0x188] sm:$0xf]
      %v692 = vld [vmem:[%s0 + $0x198] sm:$0xf]
      %v693 = vld [vmem:[%s0 + $0x1a8] sm:$0xf]
      %v694 = vld [vmem:[%s0 + $0x1b8] sm:$0xf]
      %v695 = vld [vmem:[%s0 + $0x1c8] sm:$0xf]
      %v696 = vld [vmem:[%s0 + $0x1d8] sm:$0xf]
      %v697 = vld [vmem:[%s0 + $0x1e8] sm:$0xf]
      %v698 = vld [vmem:[%s0 + $0x1f8] sm:$0xf]
      %v731 = vunpack.c.l.b16 %v667
      %v732 = vunpack.c.l.b16 %v668
      %v733 = vunpack.c.l.b16 %v669
      %v734 = vunpack.c.l.b16 %v670
      %v735 = vunpack.c.l.b16 %v671
      %v736 = vunpack.c.l.b16 %v672
      %v737 = vunpack.c.l.b16 %v673
      %v738 = vunpack.c.l.b16 %v674
      %v739 = vunpack.c.l.b16 %v675
      %v740 = vunpack.c.l.b16 %v676
      %v741 = vunpack.c.l.b16 %v677
      %v742 = vunpack.c.l.b16 %v678
      %v743 = vunpack.c.l.b16 %v679
      %v744 = vunpack.c.l.b16 %v680
      %v745 = vunpack.c.l.b16 %v681
      %v746 = vunpack.c.l.b16 %v682
      %v747 = vunpack.c.l.b16 %v683
      %v748 = vunpack.c.l.b16 %v684
      %v749 = vunpack.c.l.b16 %v685
      %v750 = vunpack.c.l.b16 %v686
      %v751 = vunpack.c.l.b16 %v687
      %v752 = vunpack.c.l.b16 %v688
      %v753 = vunpack.c.l.b16 %v689
      %v754 = vunpack.c.l.b16 %v690
      %v755 = vunpack.c.l.b16 %v691
      %v756 = vunpack.c.l.b16 %v692
      %v757 = vunpack.c.l.b16 %v693
      %v758 = vunpack.c.l.b16 %v694
      %v759 = vunpack.c.l.b16 %v695
      %v760 = vunpack.c.l.b16 %v696
      %v761 = vunpack.c.l.b16 %v697
      %v762 = vunpack.c.l.b16 %v698
      %v763 = vpack.c.b16 %v732, %v731
      %v764 = vpack.c.b16 %v734, %v733
      %v765 = vpack.c.b16 %v736, %v735
      %v766 = vpack.c.b16 %v738, %v737
      %v767 = vpack.c.b16 %v740, %v739
      %v768 = vpack.c.b16 %v742, %v741
      %v769 = vpack.c.b16 %v744, %v743
      %v770 = vpack.c.b16 %v746, %v745
      %v771 = vpack.c.b16 %v748, %v747
      %v772 = vpack.c.b16 %v750, %v749
      %v773 = vpack.c.b16 %v752, %v751
      %v774 = vpack.c.b16 %v754, %v753
      %v775 = vpack.c.b16 %v756, %v755
      %v776 = vpack.c.b16 %v758, %v757
      %v777 = vpack.c.b16 %v760, %v759
      %v778 = vpack.c.b16 %v762, %v761
      %795 = vmatprep.subr.bf16.mxu0 0
      %796 = vmatpush1.bf16.msra.mxu0 %v770
      %797 = vmatprep.subr.bf16.mxu0 0
      %798 = vmatpush1.bf16.msra.mxu0 %v769
      %799 = vmatprep.subr.bf16.mxu0 0
      %800 = vmatpush1.bf16.msra.mxu0 %v768
      %801 = vmatprep.subr.bf16.mxu0 0
      %802 = vmatpush1.bf16.msra.mxu0 %v767
      %803 = vmatprep.subr.bf16.mxu0 0
      %804 = vmatpush1.bf16.msra.mxu0 %v766
      %805 = vmatprep.subr.bf16.mxu0 0
      %806 = vmatpush1.bf16.msra.mxu0 %v765
      %807 = vmatprep.subr.bf16.mxu0 0
      %808 = vmatpush1.bf16.msra.mxu0 %v764
      %809 = vmatprep.subr.bf16.mxu0 0
      %810 = vmatpush1.bf16.msra.mxu0 %v763
      %811 = vmatprep.subr.bf16.mxu0 0
      %812 = vmatpush2.bf16.msra.mxu0 %v778
      %813 = vmatprep.subr.bf16.mxu0 0
      %814 = vmatpush2.bf16.msra.mxu0 %v777
      %815 = vmatprep.subr.bf16.mxu0 0
      %816 = vmatpush2.bf16.msra.mxu0 %v776
      %817 = vmatprep.subr.bf16.mxu0 0
      %818 = vmatpush2.bf16.msra.mxu0 %v775
      %819 = vmatprep.subr.bf16.mxu0 0
      %820 = vmatpush2.bf16.msra.mxu0 %v774
      %821 = vmatprep.subr.bf16.mxu0 0
      %822 = vmatpush2.bf16.msra.mxu0 %v773
      %823 = vmatprep.subr.bf16.mxu0 0
      %824 = vmatpush2.bf16.msra.mxu0 %v772
      %825 = vmatprep.subr.bf16.mxu0 0
      %826 = vmatpush2.bf16.msra.mxu0 %v771
      %827 = vmatprep.mubr.bf16.mxu0 %v301
      %828 = vmatmul.mubr.bf16.gmra.mxu0 %v300
      %v829 = vpop.f32.mrf.mxu0
      %v830 = vadd.f32 0.0, %v829
      %v831 = vpop.f32.mrf.mxu0
      %v832 = vpop.f32.mrf.mxu0
      %v833 = vadd.f32 0.0, %v832
      %v834 = vpop.f32.mrf.mxu0
      %835 = vmatprep.mubr.bf16.mxu0 %v303
      %836 = vmatmul.mubr.bf16.gmra.mxu0 %v302
      %v837 = vpop.f32.mrf.mxu0
      %v838 = vadd.f32 0.0, %v837
      %v839 = vpop.f32.mrf.mxu0
      %v840 = vpop.f32.mrf.mxu0
      %v841 = vadd.f32 0.0, %v840
      %v842 = vpop.f32.mrf.mxu0
      %843 = vdwg.mxu0
      %s844 = scalar_lea.vmem %s273, 64
      %845 = vst [vmem:[%s844] sm:$0xff] %v830
      %846 = vst [vmem:[%s844 + $0x8] sm:$0xff] %v833
      %847 = vst [vmem:[%s844 + $0x10] sm:$0xff] %v838
      %848 = vst [vmem:[%s844 + $0x18] sm:$0xff] %v841
      %v849 = vld [vmem:[%s0 + $0xc] sm:$0xf]
      %v850 = vld [vmem:[%s0 + $0x1c] sm:$0xf]
      %v851 = vld [vmem:[%s0 + $0x2c] sm:$0xf]
      %v852 = vld [vmem:[%s0 + $0x3c] sm:$0xf]
      %v853 = vld [vmem:[%s0 + $0x4c] sm:$0xf]
      %v854 = vld [vmem:[%s0 + $0x5c] sm:$0xf]
      %v855 = vld [vmem:[%s0 + $0x6c] sm:$0xf]
      %v856 = vld [vmem:[%s0 + $0x7c] sm:$0xf]
      %v857 = vld [vmem:[%s0 + $0x8c] sm:$0xf]
      %v858 = vld [vmem:[%s0 + $0x9c] sm:$0xf]
      %v859 = vld [vmem:[%s0 + $0xac] sm:$0xf]
      %v860 = vld [vmem:[%s0 + $0xbc] sm:$0xf]
      %v861 = vld [vmem:[%s0 + $0xcc] sm:$0xf]
      %v862 = vld [vmem:[%s0 + $0xdc] sm:$0xf]
      %v863 = vld [vmem:[%s0 + $0xec] sm:$0xf]
      %v864 = vld [vmem:[%s0 + $0xfc] sm:$0xf]
      %v865 = vld [vmem:[%s0 + $0x10c] sm:$0xf]
      %v866 = vld [vmem:[%s0 + $0x11c] sm:$0xf]
      %v867 = vld [vmem:[%s0 + $0x12c] sm:$0xf]
      %v868 = vld [vmem:[%s0 + $0x13c] sm:$0xf]
      %v869 = vld [vmem:[%s0 + $0x14c] sm:$0xf]
      %v870 = vld [vmem:[%s0 + $0x15c] sm:$0xf]
      %v871 = vld [vmem:[%s0 + $0x16c] sm:$0xf]
      %v872 = vld [vmem:[%s0 + $0x17c] sm:$0xf]
      %v873 = vld [vmem:[%s0 + $0x18c] sm:$0xf]
      %v874 = vld [vmem:[%s0 + $0x19c] sm:$0xf]
      %v875 = vld [vmem:[%s0 + $0x1ac] sm:$0xf]
      %v876 = vld [vmem:[%s0 + $0x1bc] sm:$0xf]
      %v877 = vld [vmem:[%s0 + $0x1cc] sm:$0xf]
      %v878 = vld [vmem:[%s0 + $0x1dc] sm:$0xf]
      %v879 = vld [vmem:[%s0 + $0x1ec] sm:$0xf]
      %v880 = vld [vmem:[%s0 + $0x1fc] sm:$0xf]
      %v913 = vunpack.c.l.b16 %v849
      %v914 = vunpack.c.l.b16 %v850
      %v915 = vunpack.c.l.b16 %v851
      %v916 = vunpack.c.l.b16 %v852
      %v917 = vunpack.c.l.b16 %v853
      %v918 = vunpack.c.l.b16 %v854
      %v919 = vunpack.c.l.b16 %v855
      %v920 = vunpack.c.l.b16 %v856
      %v921 = vunpack.c.l.b16 %v857
      %v922 = vunpack.c.l.b16 %v858
      %v923 = vunpack.c.l.b16 %v859
      %v924 = vunpack.c.l.b16 %v860
      %v925 = vunpack.c.l.b16 %v861
      %v926 = vunpack.c.l.b16 %v862
      %v927 = vunpack.c.l.b16 %v863
      %v928 = vunpack.c.l.b16 %v864
      %v929 = vunpack.c.l.b16 %v865
      %v930 = vunpack.c.l.b16 %v866
      %v931 = vunpack.c.l.b16 %v867
      %v932 = vunpack.c.l.b16 %v868
      %v933 = vunpack.c.l.b16 %v869
      %v934 = vunpack.c.l.b16 %v870
      %v935 = vunpack.c.l.b16 %v871
      %v936 = vunpack.c.l.b16 %v872
      %v937 = vunpack.c.l.b16 %v873
      %v938 = vunpack.c.l.b16 %v874
      %v939 = vunpack.c.l.b16 %v875
      %v940 = vunpack.c.l.b16 %v876
      %v941 = vunpack.c.l.b16 %v877
      %v942 = vunpack.c.l.b16 %v878
      %v943 = vunpack.c.l.b16 %v879
      %v944 = vunpack.c.l.b16 %v880
      %v945 = vpack.c.b16 %v914, %v913
      %v946 = vpack.c.b16 %v916, %v915
      %v947 = vpack.c.b16 %v918, %v917
      %v948 = vpack.c.b16 %v920, %v919
      %v949 = vpack.c.b16 %v922, %v921
      %v950 = vpack.c.b16 %v924, %v923
      %v951 = vpack.c.b16 %v926, %v925
      %v952 = vpack.c.b16 %v928, %v927
      %v953 = vpack.c.b16 %v930, %v929
      %v954 = vpack.c.b16 %v932, %v931
      %v955 = vpack.c.b16 %v934, %v933
      %v956 = vpack.c.b16 %v936, %v935
      %v957 = vpack.c.b16 %v938, %v937
      %v958 = vpack.c.b16 %v940, %v939
      %v959 = vpack.c.b16 %v942, %v941
      %v960 = vpack.c.b16 %v944, %v943
      %977 = vmatprep.subr.bf16.mxu0 0
      %978 = vmatpush1.bf16.msra.mxu0 %v952
      %979 = vmatprep.subr.bf16.mxu0 0
      %980 = vmatpush1.bf16.msra.mxu0 %v951
      %981 = vmatprep.subr.bf16.mxu0 0
      %982 = vmatpush1.bf16.msra.mxu0 %v950
      %983 = vmatprep.subr.bf16.mxu0 0
      %984 = vmatpush1.bf16.msra.mxu0 %v949
      %985 = vmatprep.subr.bf16.mxu0 0
      %986 = vmatpush1.bf16.msra.mxu0 %v948
      %987 = vmatprep.subr.bf16.mxu0 0
      %988 = vmatpush1.bf16.msra.mxu0 %v947
      %989 = vmatprep.subr.bf16.mxu0 0
      %990 = vmatpush1.bf16.msra.mxu0 %v946
      %991 = vmatprep.subr.bf16.mxu0 0
      %992 = vmatpush1.bf16.msra.mxu0 %v945
      %993 = vmatprep.subr.bf16.mxu0 0
      %994 = vmatpush2.bf16.msra.mxu0 %v960
      %995 = vmatprep.subr.bf16.mxu0 0
      %996 = vmatpush2.bf16.msra.mxu0 %v959
      %997 = vmatprep.subr.bf16.mxu0 0
      %998 = vmatpush2.bf16.msra.mxu0 %v958
      %999 = vmatprep.subr.bf16.mxu0 0
      %1000 = vmatpush2.bf16.msra.mxu0 %v957
      %1001 = vmatprep.subr.bf16.mxu0 0
      %1002 = vmatpush2.bf16.msra.mxu0 %v956
      %1003 = vmatprep.subr.bf16.mxu0 0
      %1004 = vmatpush2.bf16.msra.mxu0 %v955
      %1005 = vmatprep.subr.bf16.mxu0 0
      %1006 = vmatpush2.bf16.msra.mxu0 %v954
      %1007 = vmatprep.subr.bf16.mxu0 0
      %1008 = vmatpush2.bf16.msra.mxu0 %v953
      %1009 = vmatprep.mubr.bf16.mxu0 %v301
      %1010 = vmatmul.mubr.bf16.gmra.mxu0 %v300
      %v1011 = vpop.f32.mrf.mxu0
      %v1012 = vadd.f32 0.0, %v1011
      %v1013 = vpop.f32.mrf.mxu0
      %v1014 = vpop.f32.mrf.mxu0
      %v1015 = vadd.f32 0.0, %v1014
      %v1016 = vpop.f32.mrf.mxu0
      %1017 = vmatprep.mubr.bf16.mxu0 %v303
      %1018 = vmatmul.mubr.bf16.gmra.mxu0 %v302
      %v1019 = vpop.f32.mrf.mxu0
      %v1020 = vadd.f32 0.0, %v1019
      %v1021 = vpop.f32.mrf.mxu0
      %v1022 = vpop.f32.mrf.mxu0
      %v1023 = vadd.f32 0.0, %v1022
      %v1024 = vpop.f32.mrf.mxu0
      %1025 = vdwg.mxu0
      %s1026 = scalar_lea.vmem %s273, 96
      %1027 = vst [vmem:[%s1026] sm:$0xff] %v1012
      %1028 = vst [vmem:[%s1026 + $0x8] sm:$0xff] %v1015
      %1029 = vst [vmem:[%s1026 + $0x10] sm:$0xff] %v1020
      %1030 = vst [vmem:[%s1026 + $0x18] sm:$0xff] %v1023
      %s1031 = smul.u32 4, %s19
      %p1032 = scmp.lt.s32.totalorder %s18, 1
      %s1033 = scalar_select %p1032, %s18, 1
      %p1034 = scmp.lt.s32.totalorder %s1031, 3
      %s1035 = scalar_select %p1034, %s1031, 3
      %s1036 = smul.addr %s1033, 16
      %s1037 = sadd.s32 %s1035, %s1036
      %s1038 = smul.addr %s1037, 8
      %s1039 = scalar_lea.vmem %s3, %s1038
      // Predicated region
      $region33: #{fourier_filter_bank.1} parent=31 // pred_check
        %p1040 = pneg %p127
      $region34: #{fourier_filter_bank.1} parent=31 // pred_check_branch
        %1042 = sbr.rel (%p1040) target = $region36
      $region35: #{fourier_filter_bank.1} parent=31 // pred_region
        %s1043 = smul.u32 4, %s19
      $region36: #{fourier_filter_bank.1} parent=31 // pred_fallthru
        _
    $region32: #{fourier_filter_bank.1} parent=5 // pred_fallthru
      _
    %p1044 = scmp.le.s32.totalorder 2, %s9
    // Predicated region
    $region37: #{fourier_filter_bank.1} parent=5 // pred_check
      %p1045 = pneg %p1044
    $region38: #{fourier_filter_bank.1} parent=5 // pred_check_branch
      %1047 = sbr.rel (%p1045) target = $region40
    $region39: #{fourier_filter_bank.1} parent=5 // pred_region
      %s1048 = ssub.s32 %s9, 2
      // Predicated region
      $region41: #{fourier_filter_bank.1} parent=39 // pred_check
        %p1049 = pneg %p133
      $region42: #{fourier_filter_bank.1} parent=39 // pred_check_branch
        %1051 = sbr.rel (%p1049) target = $region44
      $region43: #{fourier_filter_bank.1} parent=39 // pred_region
        %s1052 = smul.u32 4, %s21
        %p1053 = scmp.lt.s32.totalorder %s20, 1
        %s1054 = scalar_select %p1053, %s20, 1
        %p1055 = scmp.lt.s32.totalorder %s1052, 3
        %s1056 = scalar_select %p1055, %s1052, 3
        %s1057 = smul.addr %s1054, 16
        %s1058 = sadd.s32 %s1056, %s1057
        %s1059 = smul.addr %s1058, 8
        %s1060 = scalar_lea.vmem %s3, %s1059
      $region44: #{fourier_filter_bank.1} parent=39 // pred_fallthru
        _
    $region40: #{fourier_filter_bank.1} parent=5 // pred_fallthru
      _
  $region6: #{fourier_filter_bank.1} parent=0 // loop_footer
    %s13 = sadd.s32 1, %s9
  $region7: #{fourier_filter_bank.1} parent=0 // loop_footer_branch
    %8 = sbr.rel target = $region3
  $region8: #{fourier_filter_bank.1} parent=0 // loop_exit
    _

</llo_original>
